<compile_context>
chip_gen: v7x
topology: tpu7x:2x2x1
jax: 0.10.0
libtpu: 0.0.40
codegen_flags: <defaults>
</compile_context>

<pallas_src>
import jax
import jax.numpy as jnp
from jax.experimental import pallas as pl
from jax.experimental.pallas import tpu as pltpu


def _prelu_kernel(ab_ref, x_ref, o_ref):
    # ab_ref: SMEM (2,) f32 holding [alpha, beta].
    x = x_ref[...]
    # Keep the elementwise chain in the input dtype (bf16 stays bf16 on
    # v6e/v7x; everything is f32 on v5e). 3 VPU ops / element.
    alpha = ab_ref[0].astype(x.dtype)
    beta = ab_ref[1].astype(x.dtype)
    # alpha * -relu(-x) + beta * relu(x)  ==  x * (x < 0 ? alpha : beta)
    o_ref[...] = (x * jnp.where(x < 0, alpha, beta)).astype(o_ref.dtype)


def _round_up(v, m):
    return -(-v // m) * m


def _tiling_defaults():
    """Generation-aware (block_bytes, vmem_limit_bytes) selection."""
    vmem_bytes = None
    try:
        info = pltpu.get_tpu_info()
        vmem_bytes = getattr(info, "vmem_capacity_bytes", None)
    except Exception:
        vmem_bytes = None
    if vmem_bytes is None:
        vmem_bytes = 64 * 1024 * 1024  # conservative: assume v7x per-TC VMEM
    if vmem_bytes <= 80 * 1024 * 1024:
        # v7x: 64 MiB/TC VMEM, ~3.2 TB/s HBM. Big blocks amortize the
        # ~0.35 us/step grid overhead; 2-in + 2-out buffers at 8 MiB = 32 MiB.
        return 8 * 1024 * 1024, 48 * 1024 * 1024
    # v5e/v6e: 128 MiB physical VMEM; ~4 MiB blocks sit at ~86% HBM roofline.
    return 4 * 1024 * 1024, 64 * 1024 * 1024


def prelu_pallas(x, alpha, beta, *, tile_rows=None, target_block_bytes=None,
                 donate_input=False):
    """PReLU forward: alpha * -relu(-x) + beta * relu(x), scalar alpha/beta."""
    orig_shape = x.shape
    dtype = x.dtype
    itemsize = jnp.dtype(dtype).itemsize
    total = x.size

    def _xla_prelu(v):
        # Tail / tiny-tensor path: single fused XLA elementwise op
        # (minimum possible HBM traffic; no pad, no slice round-trip).
        a = jnp.asarray(alpha, dtype=jnp.float32).astype(v.dtype)
        b = jnp.asarray(beta, dtype=jnp.float32).astype(v.dtype)
        return v * jnp.where(v < 0, a, b)

    flat = x.reshape(-1)
    rem = total % 128
    main = total - rem

    if main == 0:
        return _xla_prelu(flat).reshape(orig_shape)

    x_main = flat if rem == 0 else flat[:main]

    # Widest lane dim (multiple of 128, capped at 4096) dividing the prefix,
    # so output stores are full-width unmasked vst.
    lane = 128
    for cand in (4096, 2048, 1024, 512, 256, 128):
        if main % cand == 0:
            lane = cand
            break
    rows = main // lane
    x2 = x_main.reshape(rows, lane)

    default_block_bytes, vmem_limit_bytes = _tiling_defaults()
    if target_block_bytes is None:
        target_block_bytes = default_block_bytes

    if tile_rows is None:
        bytes_per_row = lane * itemsize
        # Multiple of 32 so bf16/int8 packed tiles (16/32 sublanes) stay clean.
        tile_rows = max(32, (target_block_bytes // bytes_per_row) // 32 * 32)
        # Keep >= ~4 grid steps when there is enough work: double-buffering
        # overlaps DMA with compute, and v7x shards the grid over its 2 TCs.
        if rows >= 4 * 32:
            tile_rows = min(tile_rows, max(32, _round_up(pl.cdiv(rows, 4), 32)))
    if tile_rows >= rows:
        tile_rows = rows  # single full-extent block (tiny tensor)
    grid = (pl.cdiv(rows, tile_rows),)

    ab = jnp.array([alpha, beta], dtype=jnp.float32)

    cost = pl.CostEstimate(
        flops=2 * main,
        transcendentals=0,
        bytes_accessed=2 * main * itemsize,
    )

    out_main = pl.pallas_call(
        _prelu_kernel,
        out_shape=jax.ShapeDtypeStruct((rows, lane), dtype),
        grid=grid,
        in_specs=[
            pl.BlockSpec(memory_space=pltpu.SMEM),               # [alpha, beta]
            pl.BlockSpec((tile_rows, lane), lambda i: (i, 0)),   # x tile
        ],
        out_specs=pl.BlockSpec((tile_rows, lane), lambda i: (i, 0)),
        compiler_params=pltpu.CompilerParams(
            dimension_semantics=("parallel",),
            vmem_limit_bytes=vmem_limit_bytes,
        ),
        cost_estimate=cost,
        input_output_aliases=({1: 0} if donate_input else {}),
    )(ab, x2)

    out_flat = out_main.reshape(-1)
    if rem:
        out_flat = jnp.concatenate([out_flat, _xla_prelu(flat[main:])])
    return out_flat.reshape(orig_shape)


def _ref_prelu(x, alpha, beta):
    xf = x.astype(jnp.float32)
    return (alpha * jnp.minimum(xf, 0.0) + beta * jnp.maximum(xf, 0.0)).astype(x.dtype)


if __name__ == "__main__":
    key = jax.random.PRNGKey(0)

    # Parameters matching nn.Parameter(torch.tensor(1.0)) / torch.tensor(0.0)
    alpha = 1.0
    beta = 0.0

    # Primary small NCHW input consistent with the module
    x = jax.random.normal(key, (2, 4, 16, 16), dtype=jnp.float32)
    y = prelu_pallas(x, alpha, beta)
    jax.block_until_ready(y)
    assert y.shape == x.shape and y.dtype == x.dtype
    assert jnp.allclose(y, _ref_prelu(x, alpha, beta), atol=1e-6)

    # Ragged element count (not a multiple of 128): prefix kernel + XLA tail
    k2 = jax.random.PRNGKey(1)
    x2 = jax.random.normal(k2, (3, 5, 7, 9), dtype=jnp.float32)
    y2 = prelu_pallas(x2, 0.25, 1.0)
    jax.block_until_ready(y2)
    assert jnp.allclose(y2, _ref_prelu(x2, 0.25, 1.0), atol=1e-6)

    # Larger slab hitting the wide-lane path with a multi-step grid (>= 4 steps)
    k3 = jax.random.PRNGKey(2)
    x3 = jax.random.normal(k3, (8, 16, 64, 64), dtype=jnp.float32)
    y3 = prelu_pallas(x3, 0.1, 0.9)
    jax.block_until_ready(y3)
    assert jnp.allclose(y3, _ref_prelu(x3, 0.1, 0.9), atol=1e-6)

    # Multi-step grid with a PARTIAL last block (rows=73, tile_rows=32 -> 3 steps)
    k4 = jax.random.PRNGKey(3)
    x4 = jax.random.normal(k4, (1, 73, 8, 16), dtype=jnp.float32)
    y4 = prelu_pallas(x4, 0.3, 1.2, tile_rows=32)
    jax.block_until_ready(y4)
    assert jnp.allclose(y4, _ref_prelu(x4, 0.3, 1.2), atol=1e-6)

    # Sub-32-bit dtype: elementwise math stays in bf16 inside the kernel
    k5 = jax.random.PRNGKey(4)
    x5 = jax.random.normal(k5, (2, 4, 16, 16), dtype=jnp.bfloat16)
    y5 = prelu_pallas(x5, 0.25, 1.0)
    jax.block_until_ready(y5)
    assert y5.dtype == jnp.bfloat16
    assert jnp.allclose(y5.astype(jnp.float32),
                        _ref_prelu(x5, 0.25, 1.0).astype(jnp.float32), atol=1e-2)

    print("KERNEL_OK")
</pallas_src>

<mosaic_0001>
module attributes {stable_mosaic.version = 11 : i64} {
  func.func @_prelu_kernel(%arg0: i32, %arg1: memref<2xf32, #tpu.memory_space<smem>>, %arg2: memref<1x2048xf32, #tpu.memory_space<vmem>>, %arg3: memref<1x2048xf32, #tpu.memory_space<vmem>>) attributes {dimension_semantics = [#tpu.dimension_semantics<parallel>], iteration_bounds = array<i64: 1>, scalar_prefetch = 0 : i64, scratch_operands = 0 : i64, tpu.core_type = #tpu.core_type<tc>, window_params = [{transform_indices = @transform_0, window_bounds = array<i64: 2>}, {transform_indices = @transform_1, window_bounds = array<i64: 1, 2048>}, {transform_indices = @transform_2, window_bounds = array<i64: 1, 2048>}]} {
    %c0 = arith.constant 0 : index
    %c0_0 = arith.constant 0 : index
    %0 = vector.load %arg2[%c0, %c0_0] : memref<1x2048xf32, #tpu.memory_space<vmem>>, vector<1x2048xf32>
    %c0_1 = arith.constant 0 : index
    %1 = memref.load %arg1[%c0_1] : memref<2xf32, #tpu.memory_space<smem>>
    %c1 = arith.constant 1 : index
    %2 = memref.load %arg1[%c1] : memref<2xf32, #tpu.memory_space<smem>>
    %cst = arith.constant 0.000000e+00 : f32
    %3 = vector.broadcast %cst : f32 to vector<1x2048xf32>
    %4 = arith.cmpf olt, %0, %3 : vector<1x2048xf32>
    %5 = vector.broadcast %1 : f32 to vector<1x2048xf32>
    %6 = vector.broadcast %2 : f32 to vector<1x2048xf32>
    %7 = arith.select %4, %5, %6 : vector<1x2048xi1>, vector<1x2048xf32>
    %8 = arith.mulf %0, %7 : vector<1x2048xf32>
    %c0_2 = arith.constant 0 : index
    %c0_3 = arith.constant 0 : index
    %9 = vector.load %arg3[%c0_2, %c0_3] : memref<1x2048xf32, #tpu.memory_space<vmem>>, vector<1x2048xf32>
    tpu.vector_store %arg3[%c0_2, %c0_3], %8 {strides = array<i32>} : memref<1x2048xf32, #tpu.memory_space<vmem>>, vector<1x2048xf32>,
    return
  }
  func.func @transform_0(%arg0: i32) -> i32 {
    %c0_i32 = arith.constant 0 : i32
    %c0_i32_0 = arith.constant 0 : i32
    return %c0_i32 : i32
  }
  func.func @transform_1(%arg0: i32) -> (i32, i32) {
    %c0_i32 = arith.constant 0 : i32
    %c0_i32_0 = arith.constant 0 : i32
    return %arg0, %c0_i32 : i32, i32
  }
  func.func @transform_2(%arg0: i32) -> (i32, i32) {
    %c0_i32 = arith.constant 0 : i32
    %c0_i32_0 = arith.constant 0 : i32
    return %arg0, %c0_i32 : i32, i32
  }
}

</mosaic_0001>

<llo_original>
// kernel: tpu_custom_call.1
$region0: #{tpu_custom_call.1}
  #allocation0 [shape = 'u32[]', space=smem, size = 0x4, offset = 0x4, fixed_abs, tag = 'smem constant byte address 0x4 - core index']
  #allocation1 [shape = 'u32[144,128]{1,0:T(1,128)}', space=vmem, size = 0x12000, scoped, tag = 'internal scratch']
  %s0 = inlined_call_operand.hbm [shape: f32[2], index: 0, kind: input, shape index: {}]
  %s1 = inlined_call_operand.hbm [shape: f32[1,2048], index: 1, kind: input, shape index: {}]
  %s2 = inlined_call_operand.hbm [shape: f32[1,2048], index: 2, kind: output, shape index: {}]
  %s3 = sld [smem:[#allocation0]]
  $region26: #{tpu_custom_call.1} parent=0
    _
  %s5 = ssub.s32 1, %s3
  %s6 = scalar_select 0, %s5, %s3
  $region1: #{tpu_custom_call.1} parent=0
    #allocation2 [shape = 'u8[512]{0}', space=smem, size = 0x200, scoped, tag = 'input window, operand 0, single buffered']
    #allocation3 [shape = 's32[1]{0}', space=sflag, size = 0x4, scoped, tag = 'scoped memory for tpu_custom_call.1']
    #allocation4 [shape = 's32[1]{0}', space=sflag, size = 0x4, scoped, tag = 'scoped memory for tpu_custom_call.1']
    #allocation5 [shape = 's32[1]{0}', space=sflag, size = 0x4, scoped, tag = 'scoped memory for tpu_custom_call.1']
    #allocation6 [shape = 'u8[8192]{0}', space=vmem, size = 0x2000, scoped, tag = 'input window, operand 1, single buffered']
    #allocation7 [shape = 'u8[8192]{0}', space=vmem, size = 0x2000, scoped, tag = 'output window, operand 0, single buffered']
    %7 = vsyncpa [#allocation5], 0
    %8 = vsyncpa [#allocation3], 0
    %9 = vsyncpa [#allocation4], 0
    // Predicated region
    $region2: #{tpu_custom_call.1} parent=1 // pred_check
      _
    $region3: #{tpu_custom_call.1} parent=1 // pred_check_branch
      %11 = sbr.rel (0) target = $region5
    $region4: #{tpu_custom_call.1} parent=1 // pred_region
      %s13 = ssub.s32 16, 16
      %14 = vsyncadd [#allocation5], %s13
      %17 = dma.hbm_to_smem %s0, 16, [#allocation2], [#allocation5]
    $region5: #{tpu_custom_call.1} parent=1 // pred_fallthru
      _
    // Predicated region
    $region6: #{tpu_custom_call.1} parent=1 // pred_check
      _
    $region7: #{tpu_custom_call.1} parent=1 // pred_check_branch
      %19 = sbr.rel (0) target = $region9
    $region8: #{tpu_custom_call.1} parent=1 // pred_region
      %s21 = ssub.s32 256, 256
      %22 = vsyncadd [#allocation3], %s21
      %s24 = sshll.u32 [#allocation6], 4
      %s25 = int_to_ptr.vmem [resolvable:$true] %s24
      %27 = dma.hbm_to_vmem [thread:$0]  %s1, 256, %s25, [#allocation3]
    $region9: #{tpu_custom_call.1} parent=1 // pred_fallthru
      _
    // Predicated region
    $region10: #{tpu_custom_call.1} parent=1 // pred_check
      _
    $region11: #{tpu_custom_call.1} parent=1 // pred_check_branch
      %29 = sbr.rel (0) target = $region13
    $region12: #{tpu_custom_call.1} parent=1 // pred_region
      %30 = dma.done [#allocation5], 16
    $region13: #{tpu_custom_call.1} parent=1 // pred_fallthru
      _
    // Predicated region
    $region14: #{tpu_custom_call.1} parent=1 // pred_check
      _
    $region15: #{tpu_custom_call.1} parent=1 // pred_check_branch
      %32 = sbr.rel (0) target = $region17
    $region16: #{tpu_custom_call.1} parent=1 // pred_region
      %33 = dma.done [#allocation3], 256
    $region17: #{tpu_custom_call.1} parent=1 // pred_fallthru
      _
    %34 = sfence
    %v35 = vld [vmem:[#allocation6] sm:$0xff]
    %v36 = vld [vmem:[#allocation6 + $0x8] sm:$0xff]
    %s37 = sld [smem:[#allocation2]]
    %s38 = sld [smem:[#allocation2 + $0x1]]
    %vm39 = vcmp.lt.f32.partialorder %v35, 0.0
    %vm40 = vcmp.lt.f32.partialorder %v36, 0.0
    %v41 = vstv %s37
    %v42 = vstv %s38
    %v43 = vsel %vm39, %v41, %v42
    %v44 = vsel %vm40, %v41, %v42
    %v45 = vmul.f32 %v35, %v43
    %v46 = vmul.f32 %v36, %v44
    %47 = vst [vmem:[#allocation7] sm:$0xff] %v45
    %48 = vst [vmem:[#allocation7 + $0x8] sm:$0xff] %v46
    // Predicated region
    $region18: #{tpu_custom_call.1} parent=1 // pred_check
      _
    $region19: #{tpu_custom_call.1} parent=1 // pred_check_branch
      %50 = sbr.rel (0) target = $region21
    $region20: #{tpu_custom_call.1} parent=1 // pred_region
      %s52 = ssub.s32 256, 256
      %53 = vsyncadd [#allocation4], %s52
      %s55 = sshll.u32 [#allocation7], 4
      %s56 = int_to_ptr.vmem [resolvable:$true] %s55
      %58 = dma.vmem_to_hbm [thread:$0]  %s56, 256, %s2, [#allocation4]
    $region21: #{tpu_custom_call.1} parent=1 // pred_fallthru
      _
    // Predicated region
    $region22: #{tpu_custom_call.1} parent=1 // pred_check
      _
    $region23: #{tpu_custom_call.1} parent=1 // pred_check_branch
      %60 = sbr.rel (0) target = $region25
    $region24: #{tpu_custom_call.1} parent=1 // pred_region
      %61 = dma.done [#allocation4], 256
    $region25: #{tpu_custom_call.1} parent=1 // pred_fallthru
      _
    %62 = vsyncpa [#allocation3], 1
    %63 = vsyncpa [#allocation4], 1
    %64 = vsyncpa [#allocation5], 1

</llo_original>
